<compile_context>
chip_gen: v7x
topology: tpu7x:2x2x1
jax: 0.10.0
libtpu: 0.0.40
codegen_flags: <defaults>
</compile_context>

<pallas_src>
import jax
import jax.numpy as jnp
from jax.experimental import pallas as pl
from jax.experimental.pallas import tpu as pltpu


def make_avwgcn_kernel(K: int, Ci_p: int, D: int, N: int, Co: int):
    KCp = K * Ci_p
    DKCp = D * KCp

    def avwgcn_kernel(e_ref, et_ref, xt_ref, wpt_ref, bpt_ref, o_ref):
        E = e_ref[...]           # (N, D)   f32
        ET = et_ref[...]         # (D, N)   f32
        xT = xt_ref[0]           # (Ci_p, N) f32, this grid step's batch slice

        # ---- adjacency A = softmax(relu(E @ E^T), axis=1) --------------------
        # Logits kept in f32: exp() amplifies logit error and this matmul is
        # negligible next to the main contraction.
        logits = jax.lax.dot_general(
            E, E, dimension_numbers=(((1,), (1,)), ((), ())),
            preferred_element_type=jnp.float32)                      # (N, N)
        logits = jnp.maximum(logits, 0.0)
        logits = logits - jnp.max(logits, axis=1, keepdims=True)     # stable softmax
        expl = jnp.exp(logits)
        inv = pl.reciprocal(jnp.sum(expl, axis=1, keepdims=True), approx=True)
        A = expl * inv                                               # (N, N) f32
        A_b = A.astype(jnp.bfloat16)

        # ---- Chebyshev recurrence applied directly to x_g (no T_k, no I) -----
        #   xg_0 = x,  xg_1 = A @ x,  xg_k = 2 A xg_{k-1} - xg_{k-2}
        # node-last layout: xg_k^T = xg_{k-1}^T @ A^T  (lane-dense outputs).
        xg0 = xT
        xg1 = jax.lax.dot_general(
            xT.astype(jnp.bfloat16), A_b,
            dimension_numbers=(((1,), (1,)), ((), ())),
            preferred_element_type=jnp.float32)                      # (Ci_p, N)
        pieces = [xg0, xg1]
        tm2, tm1 = xg0, xg1
        for _ in range(2, K):
            nxt = 2.0 * jax.lax.dot_general(
                tm1.astype(jnp.bfloat16), A_b,
                dimension_numbers=(((1,), (1,)), ((), ())),
                preferred_element_type=jnp.float32) - tm2
            pieces.append(nxt)
            tm2, tm1 = tm1, nxt
        xgT = jnp.concatenate(pieces, axis=0)        # (K*Ci_p, N), sublane-aligned

        # ---- Erep rebuilt in-kernel: Rrep (0/1 expansion) @ E^T ---------------
        j_idx = jax.lax.broadcasted_iota(jnp.int32, (DKCp, D), 0)
        d_idx = jax.lax.broadcasted_iota(jnp.int32, (DKCp, D), 1)
        Rrep = jnp.where((j_idx >= d_idx * KCp) & (j_idx < (d_idx + 1) * KCp),
                         1.0, 0.0)                                   # (DKCp, D) f32
        ETrep = jnp.dot(Rrep, ET, preferred_element_type=jnp.float32)  # (DKCp, N)

        # ---- per-node weighting + single lane-dense MXU contraction ----------
        xgT_tile = jnp.concatenate([xgT] * D, axis=0)                # (DKCp, N)
        yT = (ETrep * xgT_tile).astype(jnp.bfloat16)                 # f32 mul, bf16 MXU feed

        outT = jnp.dot(wpt_ref[...], yT,
                       preferred_element_type=jnp.float32)           # (Co, N)
        outT = outT + jnp.dot(bpt_ref[...], ET,
                              preferred_element_type=jnp.float32)    # bias (tiny, f32)
        o_ref[0] = outT.astype(o_ref.dtype)

    return avwgcn_kernel


def avwgcn_pallas(x, node_embed, weights_pool, bias_pool, cheb_k):
    B, N, Ci = x.shape
    D, K, Ci2, Co = weights_pool.shape
    assert K == cheb_k and Ci2 == Ci and node_embed.shape == (N, D)
    assert cheb_k >= 2, "AVWGCN requires cheb_k >= 2 (support set is [I, A, ...])"

    # Pad dim_in to a sublane multiple so in-kernel sublane concats are aligned.
    Ci_p = ((Ci + 7) // 8) * 8
    pad_i = Ci_p - Ci
    DKCp = D * K * Ci_p

    # Wrapper-side layout plumbing (free in XLA, keeps relayouts out of the kernel).
    E = node_embed.astype(jnp.float32)                                     # (N, D)
    ET = E.T                                                               # (D, N)
    xT = jnp.transpose(jnp.pad(x.astype(jnp.float32),
                               ((0, 0), (0, 0), (0, pad_i))), (0, 2, 1))   # (B, Ci_p, N)
    wp_pad = jnp.pad(weights_pool, ((0, 0), (0, 0), (0, pad_i), (0, 0)))   # (D,K,Ci_p,Co)
    wpT = wp_pad.reshape(DKCp, Co).T.astype(jnp.bfloat16)                  # (Co, DKCp)
    bpT = bias_pool.T.astype(jnp.float32)                                  # (Co, D)

    # VMEM budget: double-buffered I/O blocks + in-kernel intermediates, 2x headroom.
    f32b, bf16b = 4, 2
    per_step = (
        2 * ((N * D + D * N + Ci_p * N + Co * D + Co * N) * f32b + Co * DKCp * bf16b)
        + (2 * N * N + (K + 2) * Ci_p * N + 2 * DKCp * N + DKCp * D + 3 * Co * N) * f32b
        + (N * N + DKCp * N) * bf16b
    )
    vmem_limit = int(min(max(2 * per_step, 16 << 20), 48 << 20))

    kernel = make_avwgcn_kernel(K, Ci_p, D, N, Co)
    outT = pl.pallas_call(
        kernel,
        out_shape=jax.ShapeDtypeStruct((B, Co, N), jnp.float32),
        grid=(B,),
        in_specs=[
            pl.BlockSpec((N, D), lambda b: (0, 0)),          # E
            pl.BlockSpec((D, N), lambda b: (0, 0)),          # E^T
            pl.BlockSpec((1, Ci_p, N), lambda b: (b, 0, 0)),  # x^T batch slice
            pl.BlockSpec((Co, DKCp), lambda b: (0, 0)),       # wp flat^T (bf16)
            pl.BlockSpec((Co, D), lambda b: (0, 0)),          # bias_pool^T
        ],
        out_specs=pl.BlockSpec((1, Co, N), lambda b: (b, 0, 0)),
        compiler_params=pltpu.CompilerParams(
            dimension_semantics=("parallel",),
            vmem_limit_bytes=vmem_limit),
    )(E, ET, xT, wpT, bpT)

    return jnp.transpose(outT, (0, 2, 1))                                  # (B, N, Co)


def avwgcn_reference(x, E, wp, bp, cheb_k):
    """Pure-JAX (f32) transcription of the PyTorch forward for validation."""
    N = E.shape[0]
    A = jax.nn.softmax(jax.nn.relu(E @ E.T), axis=1)
    ss = [jnp.eye(N, dtype=x.dtype), A]
    for _ in range(2, cheb_k):
        ss.append(2.0 * (A @ ss[-1]) - ss[-2])
    S = jnp.stack(ss, axis=0)                               # (K, N, N)
    W = jnp.einsum("nd,dkio->nkio", E, wp)                  # (N, K, Ci, Co)
    bias = E @ bp                                           # (N, Co)
    x_g = jnp.einsum("knm,bmc->bknc", S, x)                 # (B, K, N, Ci)
    x_g = jnp.transpose(x_g, (0, 2, 1, 3))                  # (B, N, K, Ci)
    return jnp.einsum("bnki,nkio->bno", x_g, W) + bias


if __name__ == "__main__":
    # Small shapes consistent with AVWGCN(dim_in, dim_out, cheb_k, embed_dim)
    B, N = 2, 16
    dim_in, dim_out, cheb_k, embed_dim = 4, 8, 3, 8

    key = jax.random.PRNGKey(0)
    k_x, k_e, k_w, k_b = jax.random.split(key, 4)

    x = jax.random.normal(k_x, (B, N, dim_in), dtype=jnp.float32)
    node_embed = jax.random.normal(k_e, (N, embed_dim), dtype=jnp.float32)
    weights_pool = 0.1 * jax.random.normal(
        k_w, (embed_dim, cheb_k, dim_in, dim_out), dtype=jnp.float32)
    bias_pool = 0.1 * jax.random.normal(
        k_b, (embed_dim, dim_out), dtype=jnp.float32)

    out = avwgcn_pallas(x, node_embed, weights_pool, bias_pool, cheb_k)
    out = jax.block_until_ready(out)

    ref = avwgcn_reference(x, node_embed, weights_pool, bias_pool, cheb_k)
    assert out.shape == (B, N, dim_out)
    # Tolerance loosened vs the all-f32 version: matmul operands are bf16 and
    # the softmax denominator uses the approx EUP reciprocal (intentional trades).
    max_err = jnp.max(jnp.abs(out - ref))
    assert jnp.allclose(out, ref, atol=5e-2, rtol=5e-2), (
        f"mismatch vs reference (max abs err {max_err})")

    print("KERNEL_OK")
</pallas_src>

<mosaic_0001>
module attributes {stable_mosaic.version = 11 : i64} {
  func.func @avwgcn_kernel(%arg0: i32, %arg1: memref<16x8xf32, #tpu.memory_space<vmem>>, %arg2: memref<8x16xf32, #tpu.memory_space<vmem>>, %arg3: memref<1x8x16xf32, #tpu.memory_space<vmem>>, %arg4: memref<8x192xbf16, #tpu.memory_space<vmem>>, %arg5: memref<8x8xf32, #tpu.memory_space<vmem>>, %arg6: memref<1x8x16xf32, #tpu.memory_space<vmem>>) attributes {dimension_semantics = [#tpu.dimension_semantics<parallel>], iteration_bounds = array<i64: 2>, scalar_prefetch = 0 : i64, scratch_operands = 0 : i64, tpu.core_type = #tpu.core_type<tc>, window_params = [{pipeline_mode = #tpu.pipeline_mode<synchronous>, transform_indices = @transform_0, window_bounds = array<i64: 16, 8>}, {pipeline_mode = #tpu.pipeline_mode<synchronous>, transform_indices = @transform_1, window_bounds = array<i64: 8, 16>}, {transform_indices = @transform_2, window_bounds = array<i64: 1, 8, 16>}, {pipeline_mode = #tpu.pipeline_mode<synchronous>, transform_indices = @transform_3, window_bounds = array<i64: 8, 192>}, {pipeline_mode = #tpu.pipeline_mode<synchronous>, transform_indices = @transform_4, window_bounds = array<i64: 8, 8>}, {transform_indices = @transform_5, window_bounds = array<i64: 1, 8, 16>}]} {
    %c0 = arith.constant 0 : index
    %c0_0 = arith.constant 0 : index
    %0 = vector.load %arg1[%c0, %c0_0] : memref<16x8xf32, #tpu.memory_space<vmem>>, vector<16x8xf32>
    %c0_1 = arith.constant 0 : index
    %c0_2 = arith.constant 0 : index
    %1 = vector.load %arg2[%c0_1, %c0_2] : memref<8x16xf32, #tpu.memory_space<vmem>>, vector<8x16xf32>
    %c0_3 = arith.constant 0 : index
    %c0_4 = arith.constant 0 : index
    %c0_5 = arith.constant 0 : index
    %2 = vector.load %arg3[%c0_3, %c0_4, %c0_5] : memref<1x8x16xf32, #tpu.memory_space<vmem>>, vector<1x8x16xf32>
    %3 = vector.shape_cast %2 : vector<1x8x16xf32> to vector<8x16xf32>
    %cst = arith.constant dense<0.000000e+00> : vector<16x16xf32>
    %4 = tpu.matmul %0, %0, %cst {dimension_numbers = #tpu.dot_dimension_numbers<[1], [1], [0], [0], [0, 0, 1, 0], [], []>} : vector<16x8xf32>, vector<16x8xf32>, vector<16x16xf32> -> vector<16x16xf32>
    %cst_6 = arith.constant 0.000000e+00 : f32
    %5 = vector.broadcast %cst_6 : f32 to vector<16x16xf32>
    %6 = arith.maximumf %4, %5 : vector<16x16xf32>
    %cst_7 = arith.constant dense<0xFF800000> : vector<16xf32>
    %7 = vector.multi_reduction <maximumf>, %6, %cst_7 [1] : vector<16x16xf32> to vector<16xf32>
    %8 = vector.shape_cast %7 : vector<16xf32> to vector<16x1xf32>
    %9 = vector.broadcast %8 : vector<16x1xf32> to vector<16x16xf32>
    %10 = arith.subf %6, %9 : vector<16x16xf32>
    %11 = math.exp %10 : vector<16x16xf32>
    %cst_8 = arith.constant dense<0.000000e+00> : vector<16xf32>
    %12 = vector.multi_reduction <add>, %11, %cst_8 [1] : vector<16x16xf32> to vector<16xf32>
    %13 = vector.shape_cast %12 : vector<16xf32> to vector<16x1xf32>
    %14 = tpu.reciprocal %13 {approx = true} : vector<16x1xf32> -> vector<16x1xf32>
    %15 = vector.broadcast %14 : vector<16x1xf32> to vector<16x16xf32>
    %16 = arith.mulf %11, %15 : vector<16x16xf32>
    %17 = arith.truncf %16 : vector<16x16xf32> to vector<16x16xbf16>
    %18 = arith.truncf %3 : vector<8x16xf32> to vector<8x16xbf16>
    %cst_9 = arith.constant dense<0.000000e+00> : vector<8x16xf32>
    %19 = tpu.matmul %18, %17, %cst_9 {dimension_numbers = #tpu.dot_dimension_numbers<[1], [1], [0], [0], [0, 0, 1, 0], [], []>} : vector<8x16xbf16>, vector<16x16xbf16>, vector<8x16xf32> -> vector<8x16xf32>
    %20 = arith.truncf %19 : vector<8x16xf32> to vector<8x16xbf16>
    %cst_10 = arith.constant dense<0.000000e+00> : vector<8x16xf32>
    %21 = tpu.matmul %20, %17, %cst_10 {dimension_numbers = #tpu.dot_dimension_numbers<[1], [1], [0], [0], [0, 0, 1, 0], [], []>} : vector<8x16xbf16>, vector<16x16xbf16>, vector<8x16xf32> -> vector<8x16xf32>
    %cst_11 = arith.constant 2.000000e+00 : f32
    %22 = vector.broadcast %cst_11 : f32 to vector<8x16xf32>
    %23 = arith.mulf %22, %21 : vector<8x16xf32>
    %24 = arith.subf %23, %3 : vector<8x16xf32>
    %25 = tpu.concatenate %3, %19, %24 in 0 : vector<8x16xf32>, vector<8x16xf32>, vector<8x16xf32> -> vector<24x16xf32>
    %26 = tpu.iota {dimensions = array<i32: 0>} : vector<192x8xi32>
    %27 = tpu.iota {dimensions = array<i32: 1>} : vector<192x8xi32>
    %c24_i32 = arith.constant 24 : i32
    %28 = vector.broadcast %c24_i32 : i32 to vector<192x8xi32>
    %29 = arith.muli %27, %28 : vector<192x8xi32>
    %30 = arith.cmpi sge, %26, %29 : vector<192x8xi32>
    %c1_i32 = arith.constant 1 : i32
    %31 = vector.broadcast %c1_i32 : i32 to vector<192x8xi32>
    %32 = arith.addi %27, %31 : vector<192x8xi32>
    %c24_i32_12 = arith.constant 24 : i32
    %33 = vector.broadcast %c24_i32_12 : i32 to vector<192x8xi32>
    %34 = arith.muli %32, %33 : vector<192x8xi32>
    %35 = arith.cmpi slt, %26, %34 : vector<192x8xi32>
    %36 = arith.andi %30, %35 : vector<192x8xi1>
    %cst_13 = arith.constant 1.000000e+00 : f32
    %cst_14 = arith.constant 0.000000e+00 : f32
    %37 = vector.broadcast %cst_13 : f32 to vector<192x8xf32>
    %38 = vector.broadcast %cst_14 : f32 to vector<192x8xf32>
    %39 = arith.select %36, %37, %38 : vector<192x8xi1>, vector<192x8xf32>
    %cst_15 = arith.constant dense<0.000000e+00> : vector<192x16xf32>
    %40 = tpu.matmul %39, %1, %cst_15 {dimension_numbers = #tpu.dot_dimension_numbers<[1], [0], [0], [1], [0, 0, 1, 1], [], []>} : vector<192x8xf32>, vector<8x16xf32>, vector<192x16xf32> -> vector<192x16xf32>
    %41 = tpu.concatenate %25, %25, %25, %25, %25, %25, %25, %25 in 0 : vector<24x16xf32>, vector<24x16xf32>, vector<24x16xf32>, vector<24x16xf32>, vector<24x16xf32>, vector<24x16xf32>, vector<24x16xf32>, vector<24x16xf32> -> vector<192x16xf32>
    %42 = arith.mulf %40, %41 : vector<192x16xf32>
    %43 = arith.truncf %42 : vector<192x16xf32> to vector<192x16xbf16>
    %c0_16 = arith.constant 0 : index
    %c0_17 = arith.constant 0 : index
    %44 = vector.load %arg4[%c0_16, %c0_17] : memref<8x192xbf16, #tpu.memory_space<vmem>>, vector<8x192xbf16>
    %cst_18 = arith.constant dense<0.000000e+00> : vector<8x16xf32>
    %45 = tpu.matmul %44, %43, %cst_18 {dimension_numbers = #tpu.dot_dimension_numbers<[1], [0], [0], [1], [0, 0, 1, 1], [], []>} : vector<8x192xbf16>, vector<192x16xbf16>, vector<8x16xf32> -> vector<8x16xf32>
    %c0_19 = arith.constant 0 : index
    %c0_20 = arith.constant 0 : index
    %46 = vector.load %arg5[%c0_19, %c0_20] : memref<8x8xf32, #tpu.memory_space<vmem>>, vector<8x8xf32>
    %cst_21 = arith.constant dense<0.000000e+00> : vector<8x16xf32>
    %47 = tpu.matmul %46, %1, %cst_21 {dimension_numbers = #tpu.dot_dimension_numbers<[1], [0], [0], [1], [0, 0, 1, 1], [], []>} : vector<8x8xf32>, vector<8x16xf32>, vector<8x16xf32> -> vector<8x16xf32>
    %48 = arith.addf %45, %47 : vector<8x16xf32>
    %c0_22 = arith.constant 0 : index
    %c0_23 = arith.constant 0 : index
    %c0_24 = arith.constant 0 : index
    %49 = vector.load %arg6[%c0_22, %c0_23, %c0_24] : memref<1x8x16xf32, #tpu.memory_space<vmem>>, vector<1x8x16xf32>
    %50 = vector.shape_cast %49 : vector<1x8x16xf32> to vector<8x16xf32>
    %51 = vector.shape_cast %48 : vector<8x16xf32> to vector<1x8x16xf32>
    tpu.vector_store %arg6[%c0_22, %c0_23, %c0_24], %51 {strides = array<i32>} : memref<1x8x16xf32, #tpu.memory_space<vmem>>, vector<1x8x16xf32>,
    return
  }
  func.func @transform_0(%arg0: i32) -> (i32, i32) {
    %c0_i32 = arith.constant 0 : i32
    %c0_i32_0 = arith.constant 0 : i32
    %c0_i32_1 = arith.constant 0 : i32
    return %c0_i32, %c0_i32_0 : i32, i32
  }
  func.func @transform_1(%arg0: i32) -> (i32, i32) {
    %c0_i32 = arith.constant 0 : i32
    %c0_i32_0 = arith.constant 0 : i32
    %c0_i32_1 = arith.constant 0 : i32
    return %c0_i32, %c0_i32_0 : i32, i32
  }
  func.func @transform_2(%arg0: i32) -> (i32, i32, i32) {
    %c0_i32 = arith.constant 0 : i32
    %c0_i32_0 = arith.constant 0 : i32
    %c0_i32_1 = arith.constant 0 : i32
    return %arg0, %c0_i32, %c0_i32_0 : i32, i32, i32
  }
  func.func @transform_3(%arg0: i32) -> (i32, i32) {
    %c0_i32 = arith.constant 0 : i32
    %c0_i32_0 = arith.constant 0 : i32
    %c0_i32_1 = arith.constant 0 : i32
    return %c0_i32, %c0_i32_0 : i32, i32
  }
  func.func @transform_4(%arg0: i32) -> (i32, i32) {
    %c0_i32 = arith.constant 0 : i32
    %c0_i32_0 = arith.constant 0 : i32
    %c0_i32_1 = arith.constant 0 : i32
    return %c0_i32, %c0_i32_0 : i32, i32
  }
  func.func @transform_5(%arg0: i32) -> (i32, i32, i32) {
    %c0_i32 = arith.constant 0 : i32
    %c0_i32_0 = arith.constant 0 : i32
    %c0_i32_1 = arith.constant 0 : i32
    return %arg0, %c0_i32, %c0_i32_0 : i32, i32, i32
  }
}

</mosaic_0001>

<llo_original>
// kernel: tpu_custom_call.1
$region0: #{tpu_custom_call.1}
  #allocation0 [shape = 'u32[]', space=smem, size = 0x4, offset = 0x4, fixed_abs, tag = 'smem constant byte address 0x4 - core index']
  #allocation1 [shape = 'u32[144,128]{1,0:T(1,128)}', space=vmem, size = 0x12000, scoped, tag = 'internal scratch']
  %s0 = inlined_call_operand.vmem [shape: f32[16,8], index: 0, kind: input, shape index: {}]
  %s1 = inlined_call_operand.vmem [shape: f32[8,16], index: 1, kind: input, shape index: {}]
  %s2 = inlined_call_operand.vmem [shape: f32[2,8,16], index: 2, kind: input, shape index: {}]
  %s3 = inlined_call_operand.vmem [shape: bf16[8,192], index: 3, kind: input, shape index: {}]
  %s4 = inlined_call_operand.hbm [shape: f32[8,8], index: 4, kind: input, shape index: {}]
  %s5 = inlined_call_operand.hbm [shape: f32[2,8,16], index: 5, kind: output, shape index: {}]
  %s6 = sld [smem:[#allocation0]]
  $region57: #{tpu_custom_call.1} parent=0
    _
  %s8 = ssub.s32 1, %s6
  %s9 = scalar_select 0, %s8, %s6
  $region1: #{tpu_custom_call.1} parent=0
    #allocation2 [shape = 'u8[4096]{0}', space=vmem, size = 0x1000, scoped, tag = 'input window, operand 4, single buffered']
    #allocation3 [shape = 's32[2]{0}', space=sflag, size = 0x8, scoped, tag = 'scoped memory for tpu_custom_call.1']
    #allocation4 [shape = 's32[2]{0}', space=sflag, size = 0x8, scoped, tag = 'scoped memory for tpu_custom_call.1']
    #allocation5 [shape = 'u8[8192]{0}', space=vmem, size = 0x2000, scoped, tag = 'output window, operand 0']
    %10 = vsyncpa [#allocation3], 0
    %11 = vsyncpa [#allocation4], 0
    %s12 = scalar_lea.sflag [#allocation4], 1
    %13 = vsyncpa %s12, 0
    loop: start=0, step=1, limit=4
    $region2: #{tpu_custom_call.1} parent=1 // loop_pre_header
      _
    $region3: #{tpu_custom_call.1} parent=1 // loop_header
      %s15 = sphi 0, %s19
      %p16 = scmp.ge.s32.totalorder %s15, 4
      %s23 = sphi 0, %s23
      %s25 = sphi 0, %s23
      %s26 = sphi 0, %s25
      %s40 = sphi 0, %s26
      %s44 = sphi 0, %s44
      %s46 = sphi 0, %s44
      %s47 = sphi 0, %s46
      %s61 = sphi 0, %s47
      %s67 = sphi 0, %s69
      %s70 = sphi 0, %s67
      %s71 = sphi 0, %s70
      %s87 = sphi 0, %s71
      %s91 = sphi 0, %s91
      %s93 = sphi 0, %s91
      %s94 = sphi 0, %s93
      %s108 = sphi 0, %s94
      %s112 = sphi 0, %s112
      %s114 = sphi 0, %s112
      %s115 = sphi 0, %s114
      %s129 = sphi 0, %s115
      %s135 = sphi 0, %s137
      %s138 = sphi 0, %s135
      %s139 = sphi 0, %s138
      %s155 = sphi 0, %s139
    $region4: #{tpu_custom_call.1} parent=1 // loop_header_branch
      %18 = sbr.rel (%p16) target = $region8
    $region5: #{tpu_custom_call.1} parent=1 // loop_body
      %s20 = ssub.s32 %s15, 1
      %s21 = ssub.s32 %s15, 2
      %s22 = sadd.s32 %s15, 1
      %s24 = sadd.s32 %s23, 1
      %p27 = scmp.eq.s32.totalorder %s15, 1
      %p28 = scmp.ne.s32.totalorder %s23, %s25
      %p29 = scmp.eq.s32.totalorder %s15, 0
      %p30 = por %p28, %p29
      %p31 = scmp.ne.s32.totalorder %s23, %s25
      %p32 = scmp.eq.s32.totalorder %s20, 1
      %p33 = por %p31, %p32
      %p34 = scmp.ne.s32.totalorder %s25, %s26
      %p35 = scmp.eq.s32.totalorder %s20, 0
      %p36 = por %p34, %p35
      %p37 = scmp.ne.s32.totalorder %s25, %s26
      %p38 = scmp.eq.s32.totalorder %s21, 1
      %p39 = por %p37, %p38
      %p41 = scmp.ne.s32.totalorder %s26, %s40
      %p42 = scmp.eq.s32.totalorder %s21, 0
      %p43 = por %p41, %p42
      %s45 = sadd.s32 %s44, 1
      %p48 = scmp.eq.s32.totalorder %s15, 1
      %p49 = scmp.ne.s32.totalorder %s44, %s46
      %p50 = scmp.eq.s32.totalorder %s15, 0
      %p51 = por %p49, %p50
      %p52 = scmp.ne.s32.totalorder %s44, %s46
      %p53 = scmp.eq.s32.totalorder %s20, 1
      %p54 = por %p52, %p53
      %p55 = scmp.ne.s32.totalorder %s46, %s47
      %p56 = scmp.eq.s32.totalorder %s20, 0
      %p57 = por %p55, %p56
      %p58 = scmp.ne.s32.totalorder %s46, %s47
      %p59 = scmp.eq.s32.totalorder %s21, 1
      %p60 = por %p58, %p59
      %p62 = scmp.ne.s32.totalorder %s47, %s61
      %p63 = scmp.eq.s32.totalorder %s21, 0
      %p64 = por %p62, %p63
      %s65 = ssub.s32 %s15, %s22
      %p66 = scmp.eq.s32.totalorder %s65, 0
      %s68 = sadd.s32 %s67, 1
      %s69 = scalar_select %p66, %s67, %s68
      %p72 = pneg %p66
      %p73 = scmp.eq.s32.totalorder %s15, 1
      %p74 = por %p72, %p73
      %p75 = scmp.ne.s32.totalorder %s67, %s70
      %p76 = scmp.eq.s32.totalorder %s15, 0
      %p77 = por %p75, %p76
      %p78 = scmp.ne.s32.totalorder %s67, %s70
      %p79 = scmp.eq.s32.totalorder %s20, 1
      %p80 = por %p78, %p79
      %p81 = scmp.ne.s32.totalorder %s70, %s71
      %p82 = scmp.eq.s32.totalorder %s20, 0
      %p83 = por %p81, %p82
      %p84 = scmp.ne.s32.totalorder %s70, %s71
      %p85 = scmp.eq.s32.totalorder %s21, 1
      %p86 = por %p84, %p85
      %p88 = scmp.ne.s32.totalorder %s71, %s87
      %p89 = scmp.eq.s32.totalorder %s21, 0
      %p90 = por %p88, %p89
      %s92 = sadd.s32 %s91, 1
      %p95 = scmp.eq.s32.totalorder %s15, 1
      %p96 = scmp.ne.s32.totalorder %s91, %s93
      %p97 = scmp.eq.s32.totalorder %s15, 0
      %p98 = por %p96, %p97
      %p99 = scmp.ne.s32.totalorder %s91, %s93
      %p100 = scmp.eq.s32.totalorder %s20, 1
      %p101 = por %p99, %p100
      %p102 = scmp.ne.s32.totalorder %s93, %s94
      %p103 = scmp.eq.s32.totalorder %s20, 0
      %p104 = por %p102, %p103
      %p105 = scmp.ne.s32.totalorder %s93, %s94
      %p106 = scmp.eq.s32.totalorder %s21, 1
      %p107 = por %p105, %p106
      %p109 = scmp.ne.s32.totalorder %s94, %s108
      %p110 = scmp.eq.s32.totalorder %s21, 0
      %p111 = por %p109, %p110
      %s113 = sadd.s32 %s112, 1
      %p116 = scmp.eq.s32.totalorder %s15, 1
      %p117 = scmp.ne.s32.totalorder %s112, %s114
      %p118 = scmp.eq.s32.totalorder %s15, 0
      %p119 = por %p117, %p118
      %p120 = scmp.ne.s32.totalorder %s112, %s114
      %p121 = scmp.eq.s32.totalorder %s20, 1
      %p122 = por %p120, %p121
      %p123 = scmp.ne.s32.totalorder %s114, %s115
      %p124 = scmp.eq.s32.totalorder %s20, 0
      %p125 = por %p123, %p124
      %p126 = scmp.ne.s32.totalorder %s114, %s115
      %p127 = scmp.eq.s32.totalorder %s21, 1
      %p128 = por %p126, %p127
      %p130 = scmp.ne.s32.totalorder %s115, %s129
      %p131 = scmp.eq.s32.totalorder %s21, 0
      %p132 = por %p130, %p131
      %s133 = ssub.s32 %s15, %s22
      %p134 = scmp.eq.s32.totalorder %s133, 0
      %s136 = sadd.s32 %s135, 1
      %s137 = scalar_select %p134, %s135, %s136
      %p140 = pneg %p134
      %p141 = scmp.eq.s32.totalorder %s15, 1
      %p142 = por %p140, %p141
      %p143 = scmp.ne.s32.totalorder %s135, %s138
      %p144 = scmp.eq.s32.totalorder %s15, 0
      %p145 = por %p143, %p144
      %p146 = scmp.ne.s32.totalorder %s135, %s138
      %p147 = scmp.eq.s32.totalorder %s20, 1
      %p148 = por %p146, %p147
      %p149 = scmp.ne.s32.totalorder %s138, %s139
      %p150 = scmp.eq.s32.totalorder %s20, 0
      %p151 = por %p149, %p150
      %p152 = scmp.ne.s32.totalorder %s138, %s139
      %p153 = scmp.eq.s32.totalorder %s21, 1
      %p154 = por %p152, %p153
      %p156 = scmp.ne.s32.totalorder %s139, %s155
      %p157 = scmp.eq.s32.totalorder %s21, 0
      %p158 = por %p156, %p157
      %p159 = scmp.le.s32.totalorder 1, %s15
      %p160 = scmp.lt.s32.totalorder %s15, 3
      %p161 = pnand %p159, %p160
      %p162 = pneg %p161
      // Predicated region
      $region9: #{tpu_custom_call.1} parent=5 // pred_check
        _
      $region10: #{tpu_custom_call.1} parent=5 // pred_check_branch
        %164 = sbr.rel (%p161) target = $region12
      $region11: #{tpu_custom_call.1} parent=5 // pred_region
        %s165 = ssub.s32 %s15, 1
        // Predicated region
        $region13: #{tpu_custom_call.1} parent=11 // pred_check
          %p166 = pneg %p36
        $region14: #{tpu_custom_call.1} parent=11 // pred_check_branch
          %168 = sbr.rel (%p166) target = $region16
        $region15: #{tpu_custom_call.1} parent=11 // pred_region
          _
        $region16: #{tpu_custom_call.1} parent=11 // pred_fallthru
          _
        // Predicated region
        $region17: #{tpu_custom_call.1} parent=11 // pred_check
          %p169 = pneg %p57
        $region18: #{tpu_custom_call.1} parent=11 // pred_check_branch
          %171 = sbr.rel (%p169) target = $region20
        $region19: #{tpu_custom_call.1} parent=11 // pred_region
          _
        $region20: #{tpu_custom_call.1} parent=11 // pred_fallthru
          _
        // Predicated region
        $region21: #{tpu_custom_call.1} parent=11 // pred_check
          %p172 = pneg %p104
        $region22: #{tpu_custom_call.1} parent=11 // pred_check_branch
          %174 = sbr.rel (%p172) target = $region24
        $region23: #{tpu_custom_call.1} parent=11 // pred_region
          _
        $region24: #{tpu_custom_call.1} parent=11 // pred_fallthru
          _
        // Predicated region
        $region25: #{tpu_custom_call.1} parent=11 // pred_check
          %p175 = pneg %p125
        $region26: #{tpu_custom_call.1} parent=11 // pred_check_branch
          %177 = sbr.rel (%p175) target = $region28
        $region27: #{tpu_custom_call.1} parent=11 // pred_region
          %s179 = ssub.s32 128, 128
          %180 = vsyncadd [#allocation3], %s179
          %s182 = sshll.u32 [#allocation2], 4
          %s183 = int_to_ptr.vmem [resolvable:$true] %s182
          %185 = dma.hbm_to_vmem [thread:$0]  %s4, 128, %s183, [#allocation3]
        $region28: #{tpu_custom_call.1} parent=11 // pred_fallthru
          _
      $region12: #{tpu_custom_call.1} parent=5 // pred_fallthru
        _
      %p186 = scmp.lt.s32.totalorder %s15, 2
      // Predicated region
      $region29: #{tpu_custom_call.1} parent=5 // pred_check
        %p187 = pneg %p186
      $region30: #{tpu_custom_call.1} parent=5 // pred_check_branch
        %189 = sbr.rel (%p187) target = $region32
      $region31: #{tpu_custom_call.1} parent=5 // pred_region
        // Predicated region
        $region33: #{tpu_custom_call.1} parent=31 // pred_check
          %p190 = pneg %p77
        $region34: #{tpu_custom_call.1} parent=31 // pred_check_branch
          %192 = sbr.rel (%p190) target = $region36
        $region35: #{tpu_custom_call.1} parent=31 // pred_region
          %p193 = scmp.lt.s32.totalorder %s15, 1
          %s194 = scalar_select %p193, %s15, 1
          %s195 = smul.addr %s194, 8
          %s196 = scalar_lea.vmem %s2, %s195
        $region36: #{tpu_custom_call.1} parent=31 // pred_fallthru
          _
      $region32: #{tpu_custom_call.1} parent=5 // pred_fallthru
        _
      %p197 = scmp.le.s32.totalorder 1, %s15
      %p198 = scmp.lt.s32.totalorder %s15, 3
      %p199 = pnand %p197, %p198
      %p200 = pneg %p199
      // Predicated region
      $region37: #{tpu_custom_call.1} parent=5 // pred_check
        _
      $region38: #{tpu_custom_call.1} parent=5 // pred_check_branch
        %202 = sbr.rel (%p199) target = $region40
      $region39: #{tpu_custom_call.1} parent=5 // pred_region
        %s203 = ssub.s32 %s15, 1
        // Predicated region
        $region41: #{tpu_custom_call.1} parent=39 // pred_check
          %p204 = pneg %p125
        $region42: #{tpu_custom_call.1} parent=39 // pred_check_branch
          %206 = sbr.rel (%p204) target = $region44
        $region43: #{tpu_custom_call.1} parent=39 // pred_region
          %207 = dma.done [#allocation3], 128
        $region44: #{tpu_custom_call.1} parent=39 // pred_fallthru
          _
        %p208 = pneg %p36
        %p209 = pneg %p33
        %p210 = pneg %p57
        %p211 = pneg %p54
        %p212 = scmp.lt.s32.totalorder %s20, 1
        %s213 = scalar_select %p212, %s20, 1
        %s214 = smul.addr %s213, 8
        %s215 = scalar_lea.vmem %s2, %s214
        %p216 = pneg %p83
        %p217 = pneg %p80
        %p218 = pneg %p104
        %p219 = pneg %p101
        %p220 = pneg %p125
        %p221 = pneg %p122
        %p222 = pneg %p151
        %p223 = pneg %p148
        %s224 = sand.u32 %s138, 1
        %s225 = scalar_lea.sflag [#allocation4], %s224
        %s226 = sand.u32 %s138, 1
        %s227 = smul.addr %s226, 8
        %s228 = scalar_lea.vmem [#allocation5], %s227
        %p229 = scmp.lt.s32.totalorder %s20, 1
        %s230 = scalar_select %p229, %s20, 1
        %s231 = smul.addr %s230, 8
        %s232 = scalar_lea.vmem %s2, %s231
        %v234 = vld [vmem:[%s0] sm:$0xff]
        %v235 = vld [vmem:[%s0 + $0x8] sm:$0xff]
        %v236 = vld [vmem:[%s1] sm:$0xff]
        %v237 = vld [vmem:[%s232] sm:$0xff]
        %vm238 = vcmask 64512
        %v240 = vsel %vm238, %v234, 0
        %v243 = vsel %vm238, %v235, 0
        %245 = vmatprep.subr.mxu0 0.0
        %246 = vmatpush1.xpose.msra.mxu0 %v240
        %247 = vmatprep.subr.mxu0 0.0
        %248 = vmatpush1.xpose.msra.mxu0 %v243
        %249 = vmatprep.subr.mxu0 0.0
        %250 = vmatpush1.xpose.msra.mxu0 0.0
        %251 = vmatprep.subr.mxu0 0.0
        %252 = vmatpush1.xpose.msra.mxu0 0.0
        %253 = vmatprep.subr.mxu0 0.0
        %254 = vmatpush1.xpose.msra.mxu0 0.0
        %255 = vmatprep.subr.mxu0 0.0
        %256 = vmatpush1.xpose.msra.mxu0 0.0
        %257 = vmatprep.subr.mxu0 0.0
        %258 = vmatpush1.xpose.msra.mxu0 0.0
        %259 = vmatprep.subr.mxu0 0.0
        %260 = vmatpush1.xpose.msra.mxu0 0.0
        %261 = vmatprep.subr.mxu0 0.0
        %262 = vmatpush1.xpose.msra.mxu0 0.0
        %263 = vmatprep.subr.mxu0 0.0
        %264 = vmatpush1.xpose.msra.mxu0 0.0
        %265 = vmatprep.subr.mxu0 0.0
        %266 = vmatpush1.xpose.msra.mxu0 0.0
        %267 = vmatprep.subr.mxu0 0.0
        %268 = vmatpush1.xpose.msra.mxu0 0.0
        %269 = vmatprep.subr.mxu0 0.0
        %270 = vmatpush1.xpose.msra.mxu0 0.0
        %271 = vmatprep.subr.mxu0 0.0
        %272 = vmatpush1.xpose.msra.mxu0 0.0
        %273 = vmatprep.subr.mxu0 0.0
        %274 = vmatpush1.xpose.msra.mxu0 0.0
        %275 = vmatprep.subr.mxu0 0.0
        %276 = vmatpush1.xpose.msra.mxu0 0.0
        %277 = vmatprep.subr.mxu0 0.0
        %278 = vmatpush1.xpose.msra.mxu0 0.0
        %279 = vmatprep.subr.mxu0 0.0
        %280 = vmatpush1.xpose.msra.mxu0 0.0
        %281 = vmatprep.subr.mxu0 0.0
        %282 = vmatpush1.xpose.msra.mxu0 0.0
        %283 = vmatprep.subr.mxu0 0.0
        %284 = vmatpush1.xpose.msra.mxu0 0.0
        %285 = vmatprep.subr.mxu0 0.0
        %286 = vmatpush1.xpose.msra.mxu0 0.0
        %287 = vmatprep.subr.mxu0 0.0
        %288 = vmatpush1.xpose.msra.mxu0 0.0
        %289 = vmatprep.subr.mxu0 0.0
        %290 = vmatpush1.xpose.msra.mxu0 0.0
        %291 = vmatprep.subr.mxu0 0.0
        %292 = vmatpush1.xpose.msra.mxu0 0.0
        %293 = vmatprep.subr.mxu0 0.0
        %294 = vmatpush1.xpose.msra.mxu0 0.0
        %295 = vmatprep.subr.mxu0 0.0
        %296 = vmatpush1.xpose.msra.mxu0 0.0
        %297 = vmatprep.subr.mxu0 0.0
        %298 = vmatpush1.xpose.msra.mxu0 0.0
        %299 = vmatprep.subr.mxu0 0.0
        %300 = vmatpush1.xpose.msra.mxu0 0.0
        %301 = vmatprep.subr.mxu0 0.0
        %302 = vmatpush1.xpose.msra.mxu0 0.0
        %303 = vmatprep.subr.mxu0 0.0
        %304 = vmatpush1.xpose.msra.mxu0 0.0
        %305 = vmatprep.subr.mxu0 0.0
        %306 = vmatpush1.xpose.msra.mxu0 0.0
        %307 = vmatprep.subr.mxu0 0.0
        %308 = vmatpush1.xpose.msra.mxu0 0.0
        %309 = vmatprep.mubr.f32.mxu0 0.0
        %310 = vmatmul.mubr.f32.gmra.mrb[0].mxu0 %v240
        %v311 = vpop.f32.mrb[0].mxu0
        %v312 = vadd.f32 0.0, %v311
        %v313 = vpop.f32.mrb[0].mxu0
        %314 = vmatprep.mubr.f32.mxu0 0.0
        %315 = vmatmul.mubr.f32.gmra.mrb[0].mxu0 %v243
        %v316 = vpop.f32.mrb[0].mxu0
        %v317 = vadd.f32 0.0, %v316
        %v318 = vpop.f32.mrb[0].mxu0
        %319 = vdwg.mxu0
        %v320 = vmax.f32 %v312, 0.0
        %v321 = vmax.f32 %v317, 0.0
        %vm322 = vcmask 130048
        %v323 = vsel %vm322, %v320, -inf
        %324 = vmax.xlane.f32.xlu0 %v323
        %v325 = vpop.xlane.xlu0 %324
        %v326 = vsel %vm322, %v321, -inf
        %327 = vmax.xlane.f32.xlu0 %v326
        %v328 = vpop.xlane.xlu0 %327
        %v329 = vsub.f32 %v320, %v325
        %v330 = vsub.f32 %v321, %v328
        %v331 = vmul.f32 %v329, 1.442695
        %v332 = vpow.pop %v331
        %v333 = vmul.f32 %v330, 1.442695
        %v334 = vpow.pop %v333
        %v335 = vsel %vm322, %v332, 0.0
        %336 = vadd.xlane.f32.xlu0 %v335
        %v337 = vpop.xlane.xlu0 %336
        %v338 = vsel %vm322, %v334, 0.0
        %339 = vadd.xlane.f32.xlu0 %v338
        %v340 = vpop.xlane.xlu0 %339
        %v341 = vrcp.pop %v337
        %v342 = vrcp.pop %v340
        %v343 = vmul.f32 %v332, %v341
        %v344 = vmul.f32 %v334, %v342
        %v345 = vpack.c.bf16 %v344, %v343
        %v346 = vpack.c.bf16 %v237, %v237
        %v348 = vsel %vm322, %v346, 0
        %v351 = vsel %vm322, %v345, 0
        %353 = vmatprep.subr.bf16.mxu0 0
        %354 = vmatpush1.bf16.xpose.msra.mxu0 %v351
        %355 = vmatprep.subr.bf16.mxu0 0
        %356 = vmatpush1.bf16.xpose.msra.mxu0 0
        %357 = vmatprep.subr.bf16.mxu0 0
        %358 = vmatpush1.bf16.xpose.msra.mxu0 0
        %359 = vmatprep.subr.bf16.mxu0 0
        %360 = vmatpush1.bf16.xpose.msra.mxu0 0
        %361 = vmatprep.subr.bf16.mxu0 0
        %362 = vmatpush1.bf16.xpose.msra.mxu0 0
        %363 = vmatprep.subr.bf16.mxu0 0
        %364 = vmatpush1.bf16.xpose.msra.mxu0 0
        %365 = vmatprep.subr.bf16.mxu0 0
        %366 = vmatpush1.bf16.xpose.msra.mxu0 0
        %367 = vmatprep.subr.bf16.mxu0 0
        %368 = vmatpush1.bf16.xpose.msra.mxu0 0
        %369 = vmatprep.subr.bf16.mxu0 0
        %370 = vmatpush1.bf16.xpose.msra.mxu0 0
        %371 = vmatprep.subr.bf16.mxu0 0
        %372 = vmatpush1.bf16.xpose.msra.mxu0 0
        %373 = vmatprep.subr.bf16.mxu0 0
        %374 = vmatpush1.bf16.xpose.msra.mxu0 0
        %375 = vmatprep.subr.bf16.mxu0 0
        %376 = vmatpush1.bf16.xpose.msra.mxu0 0
        %377 = vmatprep.subr.bf16.mxu0 0
        %378 = vmatpush1.bf16.xpose.msra.mxu0 0
        %379 = vmatprep.subr.bf16.mxu0 0
        %380 = vmatpush1.bf16.xpose.msra.mxu0 0
        %381 = vmatprep.subr.bf16.mxu0 0
        %382 = vmatpush1.bf16.xpose.msra.mxu0 0
        %383 = vmatprep.subr.bf16.mxu0 0
        %384 = vmatpush1.bf16.xpose.msra.mxu0 0
        %385 = vmatprep.mubr.bf16.mxu0 0
        %386 = vmatmul.mubr.bf16.gmra.mrb[0].mxu0 %v348
        %v387 = vpop.f32.mrb[0].mxu0
        %v388 = vadd.f32 0.0, %v387
        %v389 = vpop.f32.mrb[0].mxu0
        %v390 = vpop.f32.mrb[0].mxu0
        %v391 = vpop.f32.mrb[0].mxu0
        %392 = vdwg.mxu0
        %v393 = vpack.c.bf16 %v388, %v388
        %v395 = vsel %vm322, %v393, 0
        %397 = vmatprep.subr.bf16.mxu0 0
        %398 = vmatpush1.bf16.xpose.msra.mxu0 %v351
        %399 = vmatprep.subr.bf16.mxu0 0
        %400 = vmatpush1.bf16.xpose.msra.mxu0 0
        %401 = vmatprep.subr.bf16.mxu0 0
        %402 = vmatpush1.bf16.xpose.msra.mxu0 0
        %403 = vmatprep.subr.bf16.mxu0 0
        %404 = vmatpush1.bf16.xpose.msra.mxu0 0
        %405 = vmatprep.subr.bf16.mxu0 0
        %406 = vmatpush1.bf16.xpose.msra.mxu0 0
        %407 = vmatprep.subr.bf16.mxu0 0
        %408 = vmatpush1.bf16.xpose.msra.mxu0 0
        %409 = vmatprep.subr.bf16.mxu0 0
        %410 = vmatpush1.bf16.xpose.msra.mxu0 0
        %411 = vmatprep.subr.bf16.mxu0 0
        %412 = vmatpush1.bf16.xpose.msra.mxu0 0
        %413 = vmatprep.subr.bf16.mxu0 0
        %414 = vmatpush1.bf16.xpose.msra.mxu0 0
        %415 = vmatprep.subr.bf16.mxu0 0
        %416 = vmatpush1.bf16.xpose.msra.mxu0 0
        %417 = vmatprep.subr.bf16.mxu0 0
        %418 = vmatpush1.bf16.xpose.msra.mxu0 0
        %419 = vmatprep.subr.bf16.mxu0 0
        %420 = vmatpush1.bf16.xpose.msra.mxu0 0
        %421 = vmatprep.subr.bf16.mxu0 0
        %422 = vmatpush1.bf16.xpose.msra.mxu0 0
        %423 = vmatprep.subr.bf16.mxu0 0
        %424 = vmatpush1.bf16.xpose.msra.mxu0 0
        %425 = vmatprep.subr.bf16.mxu0 0
        %426 = vmatpush1.bf16.xpose.msra.mxu0 0
        %427 = vmatprep.subr.bf16.mxu0 0
        %428 = vmatpush1.bf16.xpose.msra.mxu0 0
        %429 = vmatprep.mubr.bf16.mxu0 0
        %430 = vmatmul.mubr.bf16.gmra.mrb[0].mxu0 %v395
        %v431 = vpop.f32.mrb[0].mxu0
        %v432 = vadd.f32 0.0, %v431
        %v433 = vpop.f32.mrb[0].mxu0
        %v434 = vpop.f32.mrb[0].mxu0
        %v435 = vpop.f32.mrb[0].mxu0
        %436 = vdwg.mxu0
        %v437 = vmul.f32 %v432, 2.0
        %v438 = vsub.f32 %v437, %v237
        %v439 = vlaneseq
        %v440 = vshrl.u32 %v439, 7
        %v441 = vadd.s32 %v440, 8
        %v442 = vadd.s32 %v440, 16
        %v443 = vadd.s32 %v440, 24
        %v444 = vadd.s32 %v440, 32
        %v445 = vadd.s32 %v440, 40
        %v446 = vadd.s32 %v440, 48
        %v447 = vadd.s32 %v440, 56
        %v448 = vadd.s32 %v440, 64
        %v449 = vadd.s32 %v440, 72
        %v450 = vadd.s32 %v440, 80
        %v451 = vadd.s32 %v440, 88
        %v452 = vadd.s32 %v440, 96
        %v453 = vadd.s32 %v440, 104
        %v454 = vadd.s32 %v440, 112
        %v455 = vadd.s32 %v440, 120
        %v456 = vadd.s32 %v440, 128
        %v457 = vadd.s32 %v440, 136
        %v458 = vadd.s32 %v440, 144
        %v459 = vadd.s32 %v440, 152
        %v460 = vadd.s32 %v440, 160
        %v461 = vadd.s32 %v440, 168
        %v462 = vadd.s32 %v440, 176
        %v463 = vadd.s32 %v440, 184
        %v464 = vlaneseq
        %v465 = vand.u32 %v464, 127
        %v466 = vmul.u32 %v465, 24
        %vm467 = vcmp.ge.s32.totalorder %v440, %v466
        %vm468 = vcmp.ge.s32.totalorder %v441, %v466
        %vm469 = vcmp.ge.s32.totalorder %v442, %v466
        %vm470 = vcmp.ge.s32.totalorder %v443, %v466
        %vm471 = vcmp.ge.s32.totalorder %v444, %v466
        %vm472 = vcmp.ge.s32.totalorder %v445, %v466
        %vm473 = vcmp.ge.s32.totalorder %v446, %v466
        %vm474 = vcmp.ge.s32.totalorder %v447, %v466
        %vm475 = vcmp.ge.s32.totalorder %v448, %v466
        %vm476 = vcmp.ge.s32.totalorder %v449, %v466
        %vm477 = vcmp.ge.s32.totalorder %v450, %v466
        %vm478 = vcmp.ge.s32.totalorder %v451, %v466
        %vm479 = vcmp.ge.s32.totalorder %v452, %v466
        %vm480 = vcmp.ge.s32.totalorder %v453, %v466
        %vm481 = vcmp.ge.s32.totalorder %v454, %v466
        %vm482 = vcmp.ge.s32.totalorder %v455, %v466
        %vm483 = vcmp.ge.s32.totalorder %v456, %v466
        %vm484 = vcmp.ge.s32.totalorder %v457, %v466
        %vm485 = vcmp.ge.s32.totalorder %v458, %v466
        %vm486 = vcmp.ge.s32.totalorder %v459, %v466
        %vm487 = vcmp.ge.s32.totalorder %v460, %v466
        %vm488 = vcmp.ge.s32.totalorder %v461, %v466
        %vm489 = vcmp.ge.s32.totalorder %v462, %v466
        %vm490 = vcmp.ge.s32.totalorder %v463, %v466
        %v491 = vadd.s32 %v465, 1
        %v492 = vmul.u32 %v491, 24
        %vm493 = vcmp.lt.s32.totalorder %v440, %v492
        %vm494 = vcmp.lt.s32.totalorder %v441, %v492
        %vm495 = vcmp.lt.s32.totalorder %v442, %v492
        %vm496 = vcmp.lt.s32.totalorder %v443, %v492
        %vm497 = vcmp.lt.s32.totalorder %v444, %v492
        %vm498 = vcmp.lt.s32.totalorder %v445, %v492
        %vm499 = vcmp.lt.s32.totalorder %v446, %v492
        %vm500 = vcmp.lt.s32.totalorder %v447, %v492
        %vm501 = vcmp.lt.s32.totalorder %v448, %v492
        %vm502 = vcmp.lt.s32.totalorder %v449, %v492
        %vm503 = vcmp.lt.s32.totalorder %v450, %v492
        %vm504 = vcmp.lt.s32.totalorder %v451, %v492
        %vm505 = vcmp.lt.s32.totalorder %v452, %v492
        %vm506 = vcmp.lt.s32.totalorder %v453, %v492
        %vm507 = vcmp.lt.s32.totalorder %v454, %v492
        %vm508 = vcmp.lt.s32.totalorder %v455, %v492
        %vm509 = vcmp.lt.s32.totalorder %v456, %v492
        %vm510 = vcmp.lt.s32.totalorder %v457, %v492
        %vm511 = vcmp.lt.s32.totalorder %v458, %v492
        %vm512 = vcmp.lt.s32.totalorder %v459, %v492
        %vm513 = vcmp.lt.s32.totalorder %v460, %v492
        %vm514 = vcmp.lt.s32.totalorder %v461, %v492
        %vm515 = vcmp.lt.s32.totalorder %v462, %v492
        %vm516 = vcmp.lt.s32.totalorder %v463, %v492
        %vm517 = vmand %vm467, %vm493
        %vm518 = vmand %vm468, %vm494
        %vm519 = vmand %vm469, %vm495
        %vm520 = vmand %vm470, %vm496
        %vm521 = vmand %vm471, %vm497
        %vm522 = vmand %vm472, %vm498
        %vm523 = vmand %vm473, %vm499
        %vm524 = vmand %vm474, %vm500
        %vm525 = vmand %vm475, %vm501
        %vm526 = vmand %vm476, %vm502
        %vm527 = vmand %vm477, %vm503
        %vm528 = vmand %vm478, %vm504
        %vm529 = vmand %vm479, %vm505
        %vm530 = vmand %vm480, %vm506
        %vm531 = vmand %vm481, %vm507
        %vm532 = vmand %vm482, %vm508
        %vm533 = vmand %vm483, %vm509
        %vm534 = vmand %vm484, %vm510
        %vm535 = vmand %vm485, %vm511
        %vm536 = vmand %vm486, %vm512
        %vm537 = vmand %vm487, %vm513
        %vm538 = vmand %vm488, %vm514
        %vm539 = vmand %vm489, %vm515
        %vm540 = vmand %vm490, %vm516
        %v541 = vsel %vm517, 1.0, 0.0
        %v542 = vsel %vm518, 1.0, 0.0
        %v543 = vsel %vm519, 1.0, 0.0
        %v544 = vsel %vm520, 1.0, 0.0
        %v545 = vsel %vm521, 1.0, 0.0
        %v546 = vsel %vm522, 1.0, 0.0
        %v547 = vsel %vm523, 1.0, 0.0
        %v548 = vsel %vm524, 1.0, 0.0
        %v549 = vsel %vm525, 1.0, 0.0
        %v550 = vsel %vm526, 1.0, 0.0
        %v551 = vsel %vm527, 1.0, 0.0
        %v552 = vsel %vm528, 1.0, 0.0
        %v553 = vsel %vm529, 1.0, 0.0
        %v554 = vsel %vm530, 1.0, 0.0
        %v555 = vsel %vm531, 1.0, 0.0
        %v556 = vsel %vm532, 1.0, 0.0
        %v557 = vsel %vm533, 1.0, 0.0
        %v558 = vsel %vm534, 1.0, 0.0
        %v559 = vsel %vm535, 1.0, 0.0
        %v560 = vsel %vm536, 1.0, 0.0
        %v561 = vsel %vm537, 1.0, 0.0
        %v562 = vsel %vm538, 1.0, 0.0
        %v563 = vsel %vm539, 1.0, 0.0
        %v564 = vsel %vm540, 1.0, 0.0
        %v566 = vsel %vm238, %v541, 0
        %v569 = vsel %vm238, %v542, 0
        %v572 = vsel %vm238, %v543, 0
        %v575 = vsel %vm238, %v544, 0
        %v578 = vsel %vm238, %v545, 0
        %v581 = vsel %vm238, %v546, 0
        %v584 = vsel %vm238, %v547, 0
        %v587 = vsel %vm238, %v548, 0
        %v590 = vsel %vm238, %v549, 0
        %v593 = vsel %vm238, %v550, 0
        %v596 = vsel %vm238, %v551, 0
        %v599 = vsel %vm238, %v552, 0
        %v602 = vsel %vm238, %v553, 0
        %v605 = vsel %vm238, %v554, 0
        %v608 = vsel %vm238, %v555, 0
        %v611 = vsel %vm238, %v556, 0
        %v614 = vsel %vm238, %v557, 0
        %v617 = vsel %vm238, %v558, 0
        %v620 = vsel %vm238, %v559, 0
        %v623 = vsel %vm238, %v560, 0
        %v626 = vsel %vm238, %v561, 0
        %v629 = vsel %vm238, %v562, 0
        %v632 = vsel %vm238, %v563, 0
        %v635 = vsel %vm238, %v564, 0
        %637 = vmatprep.subr.mxu0 0.0
        %638 = vmatpush1.msra.mxu0 %v236
        %639 = vmatprep.subr.mxu0 0.0
        %640 = vmatpush1.msra.mxu0 0.0
        %641 = vmatprep.subr.mxu0 0.0
        %642 = vmatpush1.msra.mxu0 0.0
        %643 = vmatprep.subr.mxu0 0.0
        %644 = vmatpush1.msra.mxu0 0.0
        %645 = vmatprep.subr.mxu0 0.0
        %646 = vmatpush1.msra.mxu0 0.0
        %647 = vmatprep.subr.mxu0 0.0
        %648 = vmatpush1.msra.mxu0 0.0
        %649 = vmatprep.subr.mxu0 0.0
        %650 = vmatpush1.msra.mxu0 0.0
        %651 = vmatprep.subr.mxu0 0.0
        %652 = vmatpush1.msra.mxu0 0.0
        %653 = vmatprep.subr.mxu0 0.0
        %654 = vmatpush1.msra.mxu0 0.0
        %655 = vmatprep.subr.mxu0 0.0
        %656 = vmatpush1.msra.mxu0 0.0
        %657 = vmatprep.subr.mxu0 0.0
        %658 = vmatpush1.msra.mxu0 0.0
        %659 = vmatprep.subr.mxu0 0.0
        %660 = vmatpush1.msra.mxu0 0.0
        %661 = vmatprep.subr.mxu0 0.0
        %662 = vmatpush1.msra.mxu0 0.0
        %663 = vmatprep.subr.mxu0 0.0
        %664 = vmatpush1.msra.mxu0 0.0
        %665 = vmatprep.subr.mxu0 0.0
        %666 = vmatpush1.msra.mxu0 0.0
        %667 = vmatprep.subr.mxu0 0.0
        %668 = vmatpush1.msra.mxu0 0.0
        %669 = vmatprep.subr.mxu0 0.0
        %670 = vmatpush1.msra.mxu0 0.0
        %671 = vmatprep.subr.mxu0 0.0
        %672 = vmatpush1.msra.mxu0 0.0
        %673 = vmatprep.subr.mxu0 0.0
        %674 = vmatpush1.msra.mxu0 0.0
        %675 = vmatprep.subr.mxu0 0.0
        %676 = vmatpush1.msra.mxu0 0.0
        %677 = vmatprep.subr.mxu0 0.0
        %678 = vmatpush1.msra.mxu0 0.0
        %679 = vmatprep.subr.mxu0 0.0
        %680 = vmatpush1.msra.mxu0 0.0
        %681 = vmatprep.subr.mxu0 0.0
        %682 = vmatpush1.msra.mxu0 0.0
        %683 = vmatprep.subr.mxu0 0.0
        %684 = vmatpush1.msra.mxu0 0.0
        %685 = vmatprep.subr.mxu0 0.0
        %686 = vmatpush1.msra.mxu0 0.0
        %687 = vmatprep.subr.mxu0 0.0
        %688 = vmatpush1.msra.mxu0 0.0
        %689 = vmatprep.subr.mxu0 0.0
        %690 = vmatpush1.msra.mxu0 0.0
        %691 = vmatprep.subr.mxu0 0.0
        %692 = vmatpush1.msra.mxu0 0.0
        %693 = vmatprep.subr.mxu0 0.0
        %694 = vmatpush1.msra.mxu0 0.0
        %695 = vmatprep.subr.mxu0 0.0
        %696 = vmatpush1.msra.mxu0 0.0
        %697 = vmatprep.subr.mxu0 0.0
        %698 = vmatpush1.msra.mxu0 0.0
        %699 = vmatprep.subr.mxu0 0.0
        %700 = vmatpush1.msra.mxu0 0.0
        %701 = vmatprep.mubr.f32.mxu0 0.0
        %702 = vmatmul.mubr.f32.gmra.mrb[0].mxu0 %v566
        %v703 = vpop.f32.mrb[0].mxu0
        %v704 = vadd.f32 0.0, %v703
        %v705 = vpop.f32.mrb[0].mxu0
        %706 = vmatprep.mubr.f32.mxu0 0.0
        %707 = vmatmul.mubr.f32.gmra.mrb[0].mxu0 %v569
        %v708 = vpop.f32.mrb[0].mxu0
        %v709 = vadd.f32 0.0, %v708
        %v710 = vpop.f32.mrb[0].mxu0
        %711 = vmatprep.mubr.f32.mxu0 0.0
        %712 = vmatmul.mubr.f32.gmra.mrb[0].mxu0 %v572
        %v713 = vpop.f32.mrb[0].mxu0
        %v714 = vadd.f32 0.0, %v713
        %v715 = vpop.f32.mrb[0].mxu0
        %716 = vmatprep.mubr.f32.mxu0 0.0
        %717 = vmatmul.mubr.f32.gmra.mrb[0].mxu0 %v575
        %v718 = vpop.f32.mrb[0].mxu0
        %v719 = vadd.f32 0.0, %v718
        %v720 = vpop.f32.mrb[0].mxu0
        %721 = vmatprep.mubr.f32.mxu0 0.0
        %722 = vmatmul.mubr.f32.gmra.mrb[0].mxu0 %v578
        %v723 = vpop.f32.mrb[0].mxu0
        %v724 = vadd.f32 0.0, %v723
        %v725 = vpop.f32.mrb[0].mxu0
        %726 = vmatprep.mubr.f32.mxu0 0.0
        %727 = vmatmul.mubr.f32.gmra.mrb[0].mxu0 %v581
        %v728 = vpop.f32.mrb[0].mxu0
        %v729 = vadd.f32 0.0, %v728
        %v730 = vpop.f32.mrb[0].mxu0
        %731 = vmatprep.mubr.f32.mxu0 0.0
        %732 = vmatmul.mubr.f32.gmra.mrb[0].mxu0 %v584
        %v733 = vpop.f32.mrb[0].mxu0
        %v734 = vadd.f32 0.0, %v733
        %v735 = vpop.f32.mrb[0].mxu0
        %736 = vmatprep.mubr.f32.mxu0 0.0
        %737 = vmatmul.mubr.f32.gmra.mrb[0].mxu0 %v587
        %v738 = vpop.f32.mrb[0].mxu0
        %v739 = vadd.f32 0.0, %v738
        %v740 = vpop.f32.mrb[0].mxu0
        %741 = vmatprep.mubr.f32.mxu0 0.0
        %742 = vmatmul.mubr.f32.gmra.mrb[0].mxu0 %v590
        %v743 = vpop.f32.mrb[0].mxu0
        %v744 = vadd.f32 0.0, %v743
        %v745 = vpop.f32.mrb[0].mxu0
        %746 = vmatprep.mubr.f32.mxu0 0.0
        %747 = vmatmul.mubr.f32.gmra.mrb[0].mxu0 %v593
        %v748 = vpop.f32.mrb[0].mxu0
        %v749 = vadd.f32 0.0, %v748
        %v750 = vpop.f32.mrb[0].mxu0
        %751 = vmatprep.mubr.f32.mxu0 0.0
        %752 = vmatmul.mubr.f32.gmra.mrb[0].mxu0 %v596
        %v753 = vpop.f32.mrb[0].mxu0
        %v754 = vadd.f32 0.0, %v753
        %v755 = vpop.f32.mrb[0].mxu0
        %756 = vmatprep.mubr.f32.mxu0 0.0
        %757 = vmatmul.mubr.f32.gmra.mrb[0].mxu0 %v599
        %v758 = vpop.f32.mrb[0].mxu0
        %v759 = vadd.f32 0.0, %v758
        %v760 = vpop.f32.mrb[0].mxu0
        %761 = vmatprep.mubr.f32.mxu0 0.0
        %762 = vmatmul.mubr.f32.gmra.mrb[0].mxu0 %v602
        %v763 = vpop.f32.mrb[0].mxu0
        %v764 = vadd.f32 0.0, %v763
        %v765 = vpop.f32.mrb[0].mxu0
        %766 = vmatprep.mubr.f32.mxu0 0.0
        %767 = vmatmul.mubr.f32.gmra.mrb[0].mxu0 %v605
        %v768 = vpop.f32.mrb[0].mxu0
        %v769 = vadd.f32 0.0, %v768
        %v770 = vpop.f32.mrb[0].mxu0
        %771 = vmatprep.mubr.f32.mxu0 0.0
        %772 = vmatmul.mubr.f32.gmra.mrb[0].mxu0 %v608
        %v773 = vpop.f32.mrb[0].mxu0
        %v774 = vadd.f32 0.0, %v773
        %v775 = vpop.f32.mrb[0].mxu0
        %776 = vmatprep.mubr.f32.mxu0 0.0
        %777 = vmatmul.mubr.f32.gmra.mrb[0].mxu0 %v611
        %v778 = vpop.f32.mrb[0].mxu0
        %v779 = vadd.f32 0.0, %v778
        %v780 = vpop.f32.mrb[0].mxu0
        %781 = vmatprep.mubr.f32.mxu0 0.0
        %782 = vmatmul.mubr.f32.gmra.mrb[0].mxu0 %v614
        %v783 = vpop.f32.mrb[0].mxu0
        %v784 = vadd.f32 0.0, %v783
        %v785 = vpop.f32.mrb[0].mxu0
        %786 = vmatprep.mubr.f32.mxu0 0.0
        %787 = vmatmul.mubr.f32.gmra.mrb[0].mxu0 %v617
        %v788 = vpop.f32.mrb[0].mxu0
        %v789 = vadd.f32 0.0, %v788
        %v790 = vpop.f32.mrb[0].mxu0
        %791 = vmatprep.mubr.f32.mxu0 0.0
        %792 = vmatmul.mubr.f32.gmra.mrb[0].mxu0 %v620
        %v793 = vpop.f32.mrb[0].mxu0
        %v794 = vadd.f32 0.0, %v793
        %v795 = vpop.f32.mrb[0].mxu0
        %796 = vmatprep.mubr.f32.mxu0 0.0
        %797 = vmatmul.mubr.f32.gmra.mrb[0].mxu0 %v623
        %v798 = vpop.f32.mrb[0].mxu0
        %v799 = vadd.f32 0.0, %v798
        %v800 = vpop.f32.mrb[0].mxu0
        %801 = vmatprep.mubr.f32.mxu0 0.0
        %802 = vmatmul.mubr.f32.gmra.mrb[0].mxu0 %v626
        %v803 = vpop.f32.mrb[0].mxu0
        %v804 = vadd.f32 0.0, %v803
        %v805 = vpop.f32.mrb[0].mxu0
        %806 = vmatprep.mubr.f32.mxu0 0.0
        %807 = vmatmul.mubr.f32.gmra.mrb[0].mxu0 %v629
        %v808 = vpop.f32.mrb[0].mxu0
        %v809 = vadd.f32 0.0, %v808
        %v810 = vpop.f32.mrb[0].mxu0
        %811 = vmatprep.mubr.f32.mxu0 0.0
        %812 = vmatmul.mubr.f32.gmra.mrb[0].mxu0 %v632
        %v813 = vpop.f32.mrb[0].mxu0
        %v814 = vadd.f32 0.0, %v813
        %v815 = vpop.f32.mrb[0].mxu0
        %816 = vmatprep.mubr.f32.mxu0 0.0
        %817 = vmatmul.mubr.f32.gmra.mrb[0].mxu0 %v635
        %v818 = vpop.f32.mrb[0].mxu0
        %v819 = vadd.f32 0.0, %v818
        %v820 = vpop.f32.mrb[0].mxu0
        %821 = vdwg.mxu0
        %v822 = vmul.f32 %v704, %v237
        %v823 = vmul.f32 %v709, %v388
        %v824 = vmul.f32 %v714, %v438
        %v825 = vmul.f32 %v719, %v237
        %v826 = vmul.f32 %v724, %v388
        %v827 = vmul.f32 %v729, %v438
        %v828 = vmul.f32 %v734, %v237
        %v829 = vmul.f32 %v739, %v388
        %v830 = vmul.f32 %v744, %v438
        %v831 = vmul.f32 %v749, %v237
        %v832 = vmul.f32 %v754, %v388
        %v833 = vmul.f32 %v759, %v438
        %v834 = vmul.f32 %v764, %v237
        %v835 = vmul.f32 %v769, %v388
        %v836 = vmul.f32 %v774, %v438
        %v837 = vmul.f32 %v779, %v237
        %v838 = vmul.f32 %v784, %v388
        %v839 = vmul.f32 %v789, %v438
        %v840 = vmul.f32 %v794, %v237
        %v841 = vmul.f32 %v799, %v388
        %v842 = vmul.f32 %v804, %v438
        %v843 = vmul.f32 %v809, %v237
        %v844 = vmul.f32 %v814, %v388
        %v845 = vmul.f32 %v819, %v438
        %v846 = vpack.c.bf16 %v823, %v822
        %v847 = vpack.c.bf16 %v825, %v824
        %v848 = vpack.c.bf16 %v827, %v826
        %v849 = vpack.c.bf16 %v829, %v828
        %v850 = vpack.c.bf16 %v831, %v830
        %v851 = vpack.c.bf16 %v833, %v832
        %v852 = vpack.c.bf16 %v835, %v834
        %v853 = vpack.c.bf16 %v837, %v836
        %v854 = vpack.c.bf16 %v839, %v838
        %v855 = vpack.c.bf16 %v841, %v840
        %v856 = vpack.c.bf16 %v843, %v842
        %v857 = vpack.c.bf16 %v845, %v844
        %v858 = vld [vmem:[%s3] sm:$0xff]
        %v859 = vld [vmem:[#allocation2] sm:$0xff]
        %v861 = vsel %vm238, %v859, 0
        %863 = vmatprep.subr.mxu0 0.0
        %864 = vmatpush1.msra.mxu0 %v236
        %865 = vmatprep.subr.mxu0 0.0
        %866 = vmatpush1.msra.mxu0 0.0
        %867 = vmatprep.subr.mxu0 0.0
        %868 = vmatpush1.msra.mxu0 0.0
        %869 = vmatprep.subr.mxu0 0.0
        %870 = vmatpush1.msra.mxu0 0.0
        %871 = vmatprep.subr.mxu0 0.0
        %872 = vmatpush1.msra.mxu0 0.0
        %873 = vmatprep.subr.mxu0 0.0
        %874 = vmatpush1.msra.mxu0 0.0
        %875 = vmatprep.subr.mxu0 0.0
        %876 = vmatpush1.msra.mxu0 0.0
        %877 = vmatprep.subr.mxu0 0.0
        %878 = vmatpush1.msra.mxu0 0.0
        %879 = vmatprep.subr.mxu0 0.0
        %880 = vmatpush1.msra.mxu0 0.0
        %881 = vmatprep.subr.mxu0 0.0
        %882 = vmatpush1.msra.mxu0 0.0
        %883 = vmatprep.subr.mxu0 0.0
        %884 = vmatpush1.msra.mxu0 0.0
        %885 = vmatprep.subr.mxu0 0.0
        %886 = vmatpush1.msra.mxu0 0.0
        %887 = vmatprep.subr.mxu0 0.0
        %888 = vmatpush1.msra.mxu0 0.0
        %889 = vmatprep.subr.mxu0 0.0
        %890 = vmatpush1.msra.mxu0 0.0
        %891 = vmatprep.subr.mxu0 0.0
        %892 = vmatpush1.msra.mxu0 0.0
        %893 = vmatprep.subr.mxu0 0.0
        %894 = vmatpush1.msra.mxu0 0.0
        %895 = vmatprep.subr.mxu0 0.0
        %896 = vmatpush1.msra.mxu0 0.0
        %897 = vmatprep.subr.mxu0 0.0
        %898 = vmatpush1.msra.mxu0 0.0
        %899 = vmatprep.subr.mxu0 0.0
        %900 = vmatpush1.msra.mxu0 0.0
        %901 = vmatprep.subr.mxu0 0.0
        %902 = vmatpush1.msra.mxu0 0.0
        %903 = vmatprep.subr.mxu0 0.0
        %904 = vmatpush1.msra.mxu0 0.0
        %905 = vmatprep.subr.mxu0 0.0
        %906 = vmatpush1.msra.mxu0 0.0
        %907 = vmatprep.subr.mxu0 0.0
        %908 = vmatpush1.msra.mxu0 0.0
        %909 = vmatprep.subr.mxu0 0.0
        %910 = vmatpush1.msra.mxu0 0.0
        %911 = vmatprep.subr.mxu0 0.0
        %912 = vmatpush1.msra.mxu0 0.0
        %913 = vmatprep.subr.mxu0 0.0
        %914 = vmatpush1.msra.mxu0 0.0
        %915 = vmatprep.subr.mxu0 0.0
        %916 = vmatpush1.msra.mxu0 0.0
        %917 = vmatprep.subr.mxu0 0.0
        %918 = vmatpush1.msra.mxu0 0.0
        %919 = vmatprep.subr.mxu0 0.0
        %920 = vmatpush1.msra.mxu0 0.0
        %921 = vmatprep.subr.mxu0 0.0
        %922 = vmatpush1.msra.mxu0 0.0
        %923 = vmatprep.subr.mxu0 0.0
        %924 = vmatpush1.msra.mxu0 0.0
        %925 = vmatprep.subr.mxu0 0.0
        %926 = vmatpush1.msra.mxu0 0.0
        %927 = vmatprep.mubr.f32.mxu0 0.0
        %928 = vmatmul.mubr.f32.gmra.mrb[0].mxu0 %v861
        %v929 = vpop.f32.mrb[0].mxu0
        %v930 = vadd.f32 0.0, %v929
        %v931 = vpop.f32.mrb[0].mxu0
        %932 = vdwg.mxu0
        %v934 = vunpack.c.l.b16 %v858
        %v935 = vunpack.c.h.b16 %v858
        %v936 = vpack.c.b16 %v934, %v934
        %v937 = vpack.c.b16 %v935, %v935
        %vm939 = vcmask 523264
        %v941 = vsel %vm939, %v937, 0
        %943 = vmatprep.subr.bf16.mxu0 0
        %944 = vmatpush1.bf16.msra.mxu0 %v846
        %945 = vmatprep.subr.bf16.mxu0 0
        %946 = vmatpush1.bf16.msra.mxu0 %v847
        %947 = vmatprep.subr.bf16.mxu0 0
        %948 = vmatpush1.bf16.msra.mxu0 %v848
        %949 = vmatprep.subr.bf16.mxu0 0
        %950 = vmatpush1.bf16.msra.mxu0 %v849
        %951 = vmatprep.subr.bf16.mxu0 0
        %952 = vmatpush1.bf16.msra.mxu0 %v850
        %953 = vmatprep.subr.bf16.mxu0 0
        %954 = vmatpush1.bf16.msra.mxu0 %v851
        %955 = vmatprep.subr.bf16.mxu0 0
        %956 = vmatpush1.bf16.msra.mxu0 %v852
        %957 = vmatprep.subr.bf16.mxu0 0
        %958 = vmatpush1.bf16.msra.mxu0 %v853
        %959 = vmatprep.subr.bf16.mxu0 0
        %960 = vmatpush1.bf16.msra.mxu0 %v854
        %961 = vmatprep.subr.bf16.mxu0 0
        %962 = vmatpush1.bf16.msra.mxu0 %v855
        %963 = vmatprep.subr.bf16.mxu0 0
        %964 = vmatpush1.bf16.msra.mxu0 %v856
        %965 = vmatprep.subr.bf16.mxu0 0
        %966 = vmatpush1.bf16.msra.mxu0 %v857
        %967 = vmatprep.subr.bf16.mxu0 0
        %968 = vmatpush1.bf16.msra.mxu0 0
        %969 = vmatprep.subr.bf16.mxu0 0
        %970 = vmatpush1.bf16.msra.mxu0 0
        %971 = vmatprep.subr.bf16.mxu0 0
        %972 = vmatpush1.bf16.msra.mxu0 0
        %973 = vmatprep.subr.bf16.mxu0 0
        %974 = vmatpush1.bf16.msra.mxu0 0
        %975 = vmatprep.mubr.bf16.mxu0 %v941
        %976 = vmatmul.mubr.bf16.gmra.mrb[0].mxu0 %v936
        %v977 = vpop.f32.mrb[0].mxu0
        %v978 = vadd.f32 %v930, %v977
        %v979 = vpop.f32.mrb[0].mxu0
        %v980 = vpop.f32.mrb[0].mxu0
        %v981 = vpop.f32.mrb[0].mxu0
        %982 = vdwg.mxu0
        %983 = vst.msk [vmem:[%s228] sm:$0xff] %vm322, %v978
        %s984 = sand.u32 %s138, 1
        %s985 = scalar_lea.sflag [#allocation4], %s984
        %s986 = sand.u32 %s138, 1
        %s987 = smul.addr %s986, 8
        %s988 = scalar_lea.vmem [#allocation5], %s987
        // Predicated region
        $region45: #{tpu_custom_call.1} parent=39 // pred_check
          %p989 = pneg %p148
        $region46: #{tpu_custom_call.1} parent=39 // pred_check_branch
          %991 = sbr.rel (%p989) target = $region48
        $region47: #{tpu_custom_call.1} parent=39 // pred_region
          %s993 = ssub.s32 128, 128
          %994 = vsyncadd %s985, %s993
          %s995 = smul.addr %s20, 128
          %s996 = scalar_lea.hbm %s5, %s995
          %s998 = sshll.u32 %s988, 4
          %s999 = int_to_ptr.vmem [resolvable:$true] %s998
          %1001 = dma.vmem_to_hbm [thread:$0]  %s999, 128, %s996, %s985
        $region48: #{tpu_custom_call.1} parent=39 // pred_fallthru
          _
      $region40: #{tpu_custom_call.1} parent=5 // pred_fallthru
        _
      %p1002 = scmp.le.s32.totalorder 2, %s15
      // Predicated region
      $region49: #{tpu_custom_call.1} parent=5 // pred_check
        %p1003 = pneg %p1002
      $region50: #{tpu_custom_call.1} parent=5 // pred_check_branch
        %1005 = sbr.rel (%p1003) target = $region52
      $region51: #{tpu_custom_call.1} parent=5 // pred_region
        %s1006 = ssub.s32 %s15, 2
        // Predicated region
        $region53: #{tpu_custom_call.1} parent=51 // pred_check
          %p1007 = pneg %p154
        $region54: #{tpu_custom_call.1} parent=51 // pred_check_branch
          %1009 = sbr.rel (%p1007) target = $region56
        $region55: #{tpu_custom_call.1} parent=51 // pred_region
          %s1010 = sand.u32 %s139, 1
          %s1011 = scalar_lea.sflag [#allocation4], %s1010
          %s1012 = sand.u32 %s139, 1
          %s1013 = smul.addr %s1012, 8
          %s1014 = scalar_lea.vmem [#allocation5], %s1013
          %1015 = dma.done %s1011, 128
        $region56: #{tpu_custom_call.1} parent=51 // pred_fallthru
          _
      $region52: #{tpu_custom_call.1} parent=5 // pred_fallthru
        _
    $region6: #{tpu_custom_call.1} parent=1 // loop_footer
      %s19 = sadd.s32 1, %s15
    $region7: #{tpu_custom_call.1} parent=1 // loop_footer_branch
      %14 = sbr.rel target = $region3
    $region8: #{tpu_custom_call.1} parent=1 // loop_exit
      _
    %1016 = vsyncpa [#allocation3], 1
    %s1017 = scalar_lea.sflag [#allocation3], 1
    %1018 = vsyncpa %s1017, 1
    %1019 = vsyncpa [#allocation4], 1
    %s1020 = scalar_lea.sflag [#allocation4], 1
    %1021 = vsyncpa %s1020, 1

</llo_original>
